<compile_context>
chip_gen: v7x
topology: tpu7x:2x2x1
jax: 0.10.0
libtpu: 0.0.40
codegen_flags: <defaults>
</compile_context>

<pallas_src>
import functools

import jax
import jax.numpy as jnp
from jax import lax
from jax.experimental import pallas as pl
from jax.experimental.pallas import tpu as pltpu

LANE = 128                            # lane-dense last dim
TILE_BYTES_DEFAULT = 2 * 1024 * 1024  # per-input-buffer DMA tile (~2 MiB)


def _round_up(x, m):
    return ((x + m - 1) // m) * m


def _num_tensorcores():
    """Best-effort TensorCores-per-chip (>1 only on megacore/v7x-class parts)."""
    try:
        info = pltpu.get_tpu_info()
    except Exception:
        return 1
    for name in ("num_cores", "num_tensorcores", "tensorcore_count", "core_count"):
        v = getattr(info, name, None)
        if isinstance(v, int) and 1 <= v <= 4:
            return v
    return 1


def _regression_loss_kernel(pred_ref, label_ref, out_ref, acc_ref, *,
                            inv_scale, rows, tile_rows, k_tiles, masked):
    """Per tile: acc(1,128) += row-sum((p - l*inv_scale)^2); finalize -> scalar."""
    i = pl.program_id(0)   # chunk (possibly split across TensorCores)
    k = pl.program_id(1)   # reduction step within the chunk

    @pl.when(k == 0)
    def _init():
        acc_ref[...] = jnp.zeros_like(acc_ref)

    p = pred_ref[...].astype(jnp.float32)
    l = label_ref[...].astype(jnp.float32) * jnp.float32(inv_scale)
    d = p - l
    sq = d * d

    if masked:
        # The last tile may extend past `rows`; zero the garbage rows.
        row0 = (i * k_tiles + k) * tile_rows
        gid = lax.broadcasted_iota(jnp.int32, sq.shape, 0) + row0
        sq = jnp.where(gid < rows, sq, 0.0)

    # Row (sublane) reduce only -- per-step path stays cheap and hidden under
    # the streaming DMA; the cross-lane reduce is deferred to the finalize.
    acc_ref[...] += jnp.sum(sq, axis=0, keepdims=True)

    @pl.when(k == pl.num_programs(1) - 1)
    def _finalize():
        out_ref[0, 0] = jnp.sum(acc_ref[...])


def regression_loss(pred, label, task_num, scale=1, tile_bytes=TILE_BYTES_DEFAULT):
    """Pallas implementation of RegressionLoss.forward."""
    total = pred.size
    assert label.size == total, (pred.shape, label.shape)
    assert total % task_num == 0
    inv_scale = 1.0 / scale

    # Flatten (free reshapes; dtype cast happens inside the kernel).
    pred_flat = jnp.reshape(pred, (-1,))
    label_flat = jnp.reshape(label, (-1,))

    rows = total // LANE
    tail = total - rows * LANE          # < 128 elements

    # Ragged sub-128 tail: tiny plain-jnp contribution (no full-array pad).
    tail_sum = jnp.zeros((), jnp.float32)
    if tail:
        pt = pred_flat[rows * LANE:].astype(jnp.float32)
        lt = label_flat[rows * LANE:].astype(jnp.float32) * inv_scale
        tail_sum = jnp.sum((pt - lt) ** 2)

    if rows == 0:                       # too small for a kernel launch
        return tail_sum * jnp.float32(1.0 / total)

    if tail:
        # TODO(synk): total % 128 != 0 still costs one prefix-slice copy; a fully
        # copy-free path would need 1-D blocks + per-element in-kernel masking.
        pred_main, label_main = pred_flat[: rows * LANE], label_flat[: rows * LANE]
    else:
        pred_main, label_main = pred_flat, label_flat
    pred2d = pred_main.reshape(rows, LANE)
    label2d = label_main.reshape(rows, LANE)

    # Generation-aware chunking: 1 on single-TC chips, >1 only when detected.
    cores = _num_tensorcores()
    num_chunks = cores if (cores > 1 and rows >= cores * 32) else 1

    # Dtype-aware tile size (byte budget, rows rounded to 32 for packed dtypes).
    itemsize = max(pred.dtype.itemsize, label.dtype.itemsize)
    budget_rows = max(32, (tile_bytes // (LANE * itemsize)) // 32 * 32)
    if num_chunks == 1 and rows <= budget_rows:
        tile_rows = rows                # single full-array block (always legal)
    else:
        tile_rows = min(budget_rows, _round_up(pl.cdiv(rows, num_chunks), 32))
    k_tiles = pl.cdiv(rows, num_chunks * tile_rows)
    masked = num_chunks * k_tiles * tile_rows > rows

    kernel = functools.partial(
        _regression_loss_kernel, inv_scale=inv_scale, rows=rows,
        tile_rows=tile_rows, k_tiles=k_tiles, masked=masked)
    in_map = lambda i, k: (i * k_tiles + k, 0)

    partials = pl.pallas_call(
        kernel,
        out_shape=jax.ShapeDtypeStruct((num_chunks, 1), jnp.float32),
        grid_spec=pltpu.PrefetchScalarGridSpec(
            num_scalar_prefetch=0,
            grid=(num_chunks, k_tiles),
            in_specs=[
                pl.BlockSpec((tile_rows, LANE), in_map),
                pl.BlockSpec((tile_rows, LANE), in_map),
            ],
            out_specs=pl.BlockSpec(
                (1, 1), lambda i, k: (i, 0),
                memory_space=pltpu.MemorySpace.SMEM),
            scratch_shapes=[pltpu.VMEM((1, LANE), jnp.float32)],
        ),
        compiler_params=pltpu.CompilerParams(
            # TODO(synk): switch to pltpu.CORE_PARALLEL on v7x if plain
            # "parallel" does not shard the chunk axis across both TensorCores.
            dimension_semantics=(
                ("parallel" if num_chunks > 1 else "arbitrary"), "arbitrary"),
            vmem_limit_bytes=32 * 1024 * 1024,
        ),
        cost_estimate=pl.CostEstimate(
            flops=3 * rows * LANE,
            transcendentals=0,
            bytes_accessed=rows * LANE * (pred.dtype.itemsize
                                          + label.dtype.itemsize) + 4 * num_chunks,
        ),
    )(pred2d, label2d)

    # 1 / (n_rows_per_task * task_num) == 1 / total.
    return (jnp.sum(partials) + tail_sum) * jnp.float32(1.0 / total)


def _reference_loss(pred, label, task_num, scale=1):
    # Pure-JAX reproduction of the PyTorch loop for verification.
    pred_mat = jnp.reshape(pred, (-1, task_num)).astype(jnp.float32)
    label = jnp.asarray(label).astype(jnp.float32)
    loss = jnp.float32(0.0)
    for t in range(task_num):
        mse = jnp.mean((pred_mat[:, t] - label[:, t] / scale) ** 2)
        loss = loss + mse / task_num
    return loss


if __name__ == "__main__":
    task_num = 4
    scale = 2.0
    key = jax.random.PRNGKey(0)
    k1, k2, k3, k4, k5, k6 = jax.random.split(key, 6)

    # Case 1: 128-aligned total (no pad, no copy, single-step grid).
    pred1 = jax.random.normal(k1, (2, 512, task_num), dtype=jnp.float32)   # -> (1024, 4)
    label1 = jax.random.normal(k2, (1024, task_num), dtype=jnp.float32)
    out1 = jax.block_until_ready(regression_loss(pred1, label1, task_num, scale))
    ref1 = _reference_loss(pred1, label1, task_num, scale)
    assert jnp.allclose(out1, ref1, rtol=1e-5, atol=1e-6), (out1, ref1)

    # Case 2: ragged total (sub-128 tail handled in the wrapper, full-array block).
    pred2 = jax.random.normal(k3, (300, task_num), dtype=jnp.float32)
    label2 = jax.random.normal(k4, (300, task_num), dtype=jnp.float32)
    out2 = jax.block_until_ready(regression_loss(pred2, label2, task_num, scale))
    ref2 = _reference_loss(pred2, label2, task_num, scale)
    assert jnp.allclose(out2, ref2, rtol=1e-5, atol=1e-6), (out2, ref2)

    # Case 3: bf16 inputs, multi-step reduction grid with in-kernel tile masking.
    pred3 = jax.random.normal(k5, (6000, task_num), dtype=jnp.bfloat16)
    label3 = jax.random.normal(k6, (6000, task_num), dtype=jnp.bfloat16)
    out3 = jax.block_until_ready(
        regression_loss(pred3, label3, task_num, scale, tile_bytes=32 * 1024))
    ref3 = _reference_loss(pred3, label3, task_num, scale)
    assert jnp.allclose(out3, ref3, rtol=1e-3, atol=1e-4), (out3, ref3)

    print("KERNEL_OK")
</pallas_src>

<mosaic_0001>
module attributes {stable_mosaic.version = 11 : i64} {
  func.func @_regression_loss_kernel(%arg0: i32, %arg1: i32, %arg2: memref<32x128xf32, #tpu.memory_space<vmem>>, %arg3: memref<32x128xf32, #tpu.memory_space<vmem>>, %arg4: memref<1x1xf32, #tpu.memory_space<smem>>, %arg5: memref<1x128xf32, #tpu.memory_space<vmem>>) attributes {dimension_semantics = [#tpu.dimension_semantics<arbitrary>, #tpu.dimension_semantics<arbitrary>], iteration_bounds = array<i64: 1, 1>, scalar_prefetch = 0 : i64, scratch_operands = 1 : i64, tpu.core_type = #tpu.core_type<tc>, window_params = [{transform_indices = @transform_0, window_bounds = array<i64: 32, 128>}, {transform_indices = @transform_1, window_bounds = array<i64: 32, 128>}, {transform_indices = @transform_2, window_bounds = array<i64: 1, 1>}]} {
    %c0_i32 = arith.constant 0 : i32
    %0 = arith.cmpi eq, %arg1, %c0_i32 : i32
    %1 = arith.extui %0 : i1 to i32
    %c0_i32_0 = arith.constant 0 : i32
    %2 = arith.cmpi ne, %1, %c0_i32_0 : i32
    scf.if %2 {
      %cst_11 = arith.constant 0.000000e+00 : f32
      %17 = vector.broadcast %cst_11 : f32 to vector<1x128xf32>
      %c0_12 = arith.constant 0 : index
      %c0_13 = arith.constant 0 : index
      %18 = vector.load %arg5[%c0_12, %c0_13] : memref<1x128xf32, #tpu.memory_space<vmem>>, vector<1x128xf32>
      tpu.vector_store %arg5[%c0_12, %c0_13], %17 {strides = array<i32>} : memref<1x128xf32, #tpu.memory_space<vmem>>, vector<1x128xf32>,
    } else {
    }
    %c0 = arith.constant 0 : index
    %c0_1 = arith.constant 0 : index
    %3 = vector.load %arg2[%c0, %c0_1] : memref<32x128xf32, #tpu.memory_space<vmem>>, vector<32x128xf32>
    %c0_2 = arith.constant 0 : index
    %c0_3 = arith.constant 0 : index
    %4 = vector.load %arg3[%c0_2, %c0_3] : memref<32x128xf32, #tpu.memory_space<vmem>>, vector<32x128xf32>
    %cst = arith.constant 5.000000e-01 : f32
    %5 = vector.broadcast %cst : f32 to vector<32x128xf32>
    %6 = arith.mulf %4, %5 : vector<32x128xf32>
    %7 = arith.subf %3, %6 : vector<32x128xf32>
    %8 = arith.mulf %7, %7 : vector<32x128xf32>
    %c0_4 = arith.constant 0 : index
    %c0_5 = arith.constant 0 : index
    %9 = vector.load %arg5[%c0_4, %c0_5] : memref<1x128xf32, #tpu.memory_space<vmem>>, vector<1x128xf32>
    %cst_6 = arith.constant dense<0.000000e+00> : vector<128xf32>
    %10 = vector.multi_reduction <add>, %8, %cst_6 [0] : vector<32x128xf32> to vector<128xf32>
    %11 = vector.shape_cast %10 : vector<128xf32> to vector<1x128xf32>
    %12 = arith.addf %9, %11 : vector<1x128xf32>
    %c0_7 = arith.constant 0 : index
    %c0_8 = arith.constant 0 : index
    %13 = vector.load %arg5[%c0_7, %c0_8] : memref<1x128xf32, #tpu.memory_space<vmem>>, vector<1x128xf32>
    tpu.vector_store %arg5[%c0_7, %c0_8], %12 {strides = array<i32>} : memref<1x128xf32, #tpu.memory_space<vmem>>, vector<1x128xf32>,
    %c0_i32_9 = arith.constant 0 : i32
    %14 = arith.cmpi eq, %arg1, %c0_i32_9 : i32
    %15 = arith.extui %14 : i1 to i32
    %c0_i32_10 = arith.constant 0 : i32
    %16 = arith.cmpi ne, %15, %c0_i32_10 : i32
    scf.if %16 {
      %c0_11 = arith.constant 0 : index
      %c0_12 = arith.constant 0 : index
      %17 = vector.load %arg5[%c0_11, %c0_12] : memref<1x128xf32, #tpu.memory_space<vmem>>, vector<1x128xf32>
      %18 = vector.shape_cast %17 : vector<1x128xf32> to vector<1x1x128xf32>
      %cst_13 = arith.constant dense<0.000000e+00> : vector<1xf32>
      %19 = vector.multi_reduction <add>, %18, %cst_13 [1, 2] : vector<1x1x128xf32> to vector<1xf32>
      %20 = vector.shape_cast %19 : vector<1xf32> to vector<1x1x1xf32>
      %21 = vector.extract %20[0, 0, 0] : f32 from vector<1x1x1xf32>
      %c0_14 = arith.constant 0 : index
      %c0_15 = arith.constant 0 : index
      %22 = memref.load %arg4[%c0_14, %c0_15] : memref<1x1xf32, #tpu.memory_space<smem>>
      memref.store %21, %arg4[%c0_14, %c0_15] : memref<1x1xf32, #tpu.memory_space<smem>>
    } else {
    }
    return
  }
  func.func @transform_0(%arg0: i32, %arg1: i32) -> (i32, i32) {
    %c1_i32 = arith.constant 1 : i32
    %0 = arith.muli %arg0, %c1_i32 : i32
    %1 = arith.addi %0, %arg1 : i32
    %c0_i32 = arith.constant 0 : i32
    %c0_i32_0 = arith.constant 0 : i32
    return %1, %c0_i32 : i32, i32
  }
  func.func @transform_1(%arg0: i32, %arg1: i32) -> (i32, i32) {
    %c1_i32 = arith.constant 1 : i32
    %0 = arith.muli %arg0, %c1_i32 : i32
    %1 = arith.addi %0, %arg1 : i32
    %c0_i32 = arith.constant 0 : i32
    %c0_i32_0 = arith.constant 0 : i32
    return %1, %c0_i32 : i32, i32
  }
  func.func @transform_2(%arg0: i32, %arg1: i32) -> (i32, i32) {
    %c0_i32 = arith.constant 0 : i32
    %c0_i32_0 = arith.constant 0 : i32
    return %arg0, %c0_i32 : i32, i32
  }
}

</mosaic_0001>

<llo_original>
// kernel: tpu_custom_call.1
$region0: #{tpu_custom_call.1}
  #allocation0 [shape = 'u32[]', space=smem, size = 0x4, offset = 0x4, fixed_abs, tag = 'smem constant byte address 0x4 - core index']
  #allocation1 [shape = 'u32[144,128]{1,0:T(1,128)}', space=vmem, size = 0x12000, scoped, tag = 'internal scratch']
  #allocation2 [shape = 'f32[1,128]{1,0:T(1,128)}', space=vmem, size = 0x200, scoped, tag = 'scratch operand']
  %s0 = inlined_call_operand.hbm [shape: f32[32,128], index: 0, kind: input, shape index: {}]
  %s1 = inlined_call_operand.hbm [shape: f32[32,128], index: 1, kind: input, shape index: {}]
  %s2 = inlined_call_operand.hbm [shape: f32[1,1], index: 2, kind: output, shape index: {}]
  %s3 = sld [smem:[#allocation0]]
  $region34: #{tpu_custom_call.1} parent=0
    _
  %s5 = ssub.s32 1, %s3
  %s6 = scalar_select 0, %s5, %s3
  $region1: #{tpu_custom_call.1} parent=0
    #allocation3 [shape = 'u8[16384]{0}', space=vmem, size = 0x4000, scoped, tag = 'input window, operand 0, single buffered']
    #allocation4 [shape = 's32[1]{0}', space=sflag, size = 0x4, scoped, tag = 'scoped memory for tpu_custom_call.1']
    #allocation5 [shape = 's32[1]{0}', space=sflag, size = 0x4, scoped, tag = 'scoped memory for tpu_custom_call.1']
    #allocation6 [shape = 'u8[16384]{0}', space=vmem, size = 0x4000, scoped, tag = 'input window, operand 1, single buffered']
    #allocation7 [shape = 's32[1]{0}', space=sflag, size = 0x4, scoped, tag = 'scoped memory for tpu_custom_call.1']
    #allocation8 [shape = 'u8[512]{0}', space=smem, size = 0x200, scoped, tag = 'output window, operand 0, single buffered']
    %7 = vsyncpa [#allocation4], 0
    %8 = vsyncpa [#allocation7], 0
    %9 = vsyncpa [#allocation5], 0
    // Predicated region
    $region2: #{tpu_custom_call.1} parent=1 // pred_check
      _
    $region3: #{tpu_custom_call.1} parent=1 // pred_check_branch
      %11 = sbr.rel (0) target = $region5
    $region4: #{tpu_custom_call.1} parent=1 // pred_region
      %s12 = sadd.s32 0, 0
      %s13 = smul.u32 4, %s12
      %s15 = ssub.s32 512, 512
      %16 = vsyncadd [#allocation4], %s15
      %s17 = smul.addr %s13, 128
      %s18 = scalar_lea.hbm %s0, %s17
      %s19 = sshll.u32 [#allocation3], 4
      %s20 = int_to_ptr.vmem [resolvable:$true] %s19
      %25 = dma.hbm_to_vmem [thread:$0]  %s18, 512, %s20, [#allocation4], 128, 128, 8
    $region5: #{tpu_custom_call.1} parent=1 // pred_fallthru
      _
    // Predicated region
    $region6: #{tpu_custom_call.1} parent=1 // pred_check
      _
    $region7: #{tpu_custom_call.1} parent=1 // pred_check_branch
      %27 = sbr.rel (0) target = $region9
    $region8: #{tpu_custom_call.1} parent=1 // pred_region
      %s28 = sadd.s32 0, 0
      %s29 = smul.u32 4, %s28
      %s31 = ssub.s32 512, 512
      %32 = vsyncadd [#allocation7], %s31
      %s33 = smul.addr %s29, 128
      %s34 = scalar_lea.hbm %s1, %s33
      %s35 = sshll.u32 [#allocation6], 4
      %s36 = int_to_ptr.vmem [resolvable:$true] %s35
      %41 = dma.hbm_to_vmem [thread:$0]  %s34, 512, %s36, [#allocation7], 128, 128, 8
    $region9: #{tpu_custom_call.1} parent=1 // pred_fallthru
      _
    // Predicated region
    $region10: #{tpu_custom_call.1} parent=1 // pred_check
      _
    $region11: #{tpu_custom_call.1} parent=1 // pred_check_branch
      %43 = sbr.rel (0) target = $region13
    $region12: #{tpu_custom_call.1} parent=1 // pred_region
      %44 = dma.done [#allocation4], 512
    $region13: #{tpu_custom_call.1} parent=1 // pred_fallthru
      _
    // Predicated region
    $region14: #{tpu_custom_call.1} parent=1 // pred_check
      _
    $region15: #{tpu_custom_call.1} parent=1 // pred_check_branch
      %46 = sbr.rel (0) target = $region17
    $region16: #{tpu_custom_call.1} parent=1 // pred_region
      %47 = dma.done [#allocation7], 512
    $region17: #{tpu_custom_call.1} parent=1 // pred_fallthru
      _
    %s48 = sadd.s32 0, 0
    %s49 = smul.u32 4, %s48
    %s50 = sadd.s32 0, 0
    %s51 = smul.u32 4, %s50
    %p52 = scmp.eq.s32.totalorder 0, 0
    // Predicated region
    $region18: #{tpu_custom_call.1} parent=1 // pred_check
      %p53 = pneg %p52
    $region19: #{tpu_custom_call.1} parent=1 // pred_check_branch
      %55 = sbr.rel (%p53) target = $region21
    $region20: #{tpu_custom_call.1} parent=1 // pred_region
      %56 = vst [vmem:[#allocation2] sm:$0x1] 0.0
    $region21: #{tpu_custom_call.1} parent=1 // pred_fallthru
      _
    %v57 = vld [vmem:[#allocation3] sm:$0xff]
    %v58 = vld [vmem:[#allocation3 + $0x8] sm:$0xff]
    %v59 = vld [vmem:[#allocation3 + $0x10] sm:$0xff]
    %v60 = vld [vmem:[#allocation3 + $0x18] sm:$0xff]
    %v61 = vld [vmem:[#allocation6] sm:$0xff]
    %v62 = vld [vmem:[#allocation6 + $0x8] sm:$0xff]
    %v63 = vld [vmem:[#allocation6 + $0x10] sm:$0xff]
    %v64 = vld [vmem:[#allocation6 + $0x18] sm:$0xff]
    %v65 = vmul.f32 %v61, 0.5
    %v66 = vmul.f32 %v62, 0.5
    %v67 = vmul.f32 %v63, 0.5
    %v68 = vmul.f32 %v64, 0.5
    %v69 = vsub.f32 %v57, %v65
    %v70 = vsub.f32 %v58, %v66
    %v71 = vsub.f32 %v59, %v67
    %v72 = vsub.f32 %v60, %v68
    %v73 = vmul.f32 %v69, %v69
    %v74 = vmul.f32 %v70, %v70
    %v75 = vmul.f32 %v71, %v71
    %v76 = vmul.f32 %v72, %v72
    %v77 = vld [vmem:[#allocation2] sm:$0x1]
    %v78 = vadd.f32 %v73, %v74
    %v79 = vadd.f32 %v78, %v75
    %v80 = vadd.f32 %v79, %v76
    %v81 = vrot.slane %v80, 4
    %v82 = vadd.f32 %v80, %v81
    %v83 = vrot.slane %v82, 2
    %v84 = vadd.f32 %v82, %v83
    %v85 = vrot.slane %v84, 1
    %v86 = vadd.f32 %v84, %v85
    %v87 = vadd.f32 %v77, %v86
    %88 = vst [vmem:[#allocation2] sm:$0x1] %v87
    // Predicated region
    $region22: #{tpu_custom_call.1} parent=1 // pred_check
      %p89 = pneg %p52
    $region23: #{tpu_custom_call.1} parent=1 // pred_check_branch
      %91 = sbr.rel (%p89) target = $region25
    $region24: #{tpu_custom_call.1} parent=1 // pred_region
      %v92 = vld [vmem:[#allocation2] sm:$0x1]
      %vm93 = vcmask 1040384
      %v94 = vsel %vm93, %v92, 0.0
      %95 = vadd.xlane.f32.xlu0 %v94
      %v96 = vpop.xlane.xlu0 %95
      %v97 = vrot.slane %v96, 4
      %v98 = vadd.f32 %v96, %v97
      %v99 = vrot.slane %v98, 2
      %v100 = vadd.f32 %v98, %v99
      %v101 = vrot.slane %v100, 1
      %v102 = vadd.f32 %v100, %v101
      %s103 = vtos %v102
      %s104 = scalar_lea.smem [#allocation8], 0
      %105 = sst [smem:[%s104]] %s103
    $region25: #{tpu_custom_call.1} parent=1 // pred_fallthru
      _
    // Predicated region
    $region26: #{tpu_custom_call.1} parent=1 // pred_check
      _
    $region27: #{tpu_custom_call.1} parent=1 // pred_check_branch
      %107 = sbr.rel (0) target = $region29
    $region28: #{tpu_custom_call.1} parent=1 // pred_region
      %s109 = ssub.s32 16, 16
      %110 = vsyncadd [#allocation5], %s109
      %113 = dma.smem_to_hbm [#allocation8], 16, %s2, [#allocation5]
    $region29: #{tpu_custom_call.1} parent=1 // pred_fallthru
      _
    // Predicated region
    $region30: #{tpu_custom_call.1} parent=1 // pred_check
      _
    $region31: #{tpu_custom_call.1} parent=1 // pred_check_branch
      %115 = sbr.rel (0) target = $region33
    $region32: #{tpu_custom_call.1} parent=1 // pred_region
      %116 = dma.done [#allocation5], 16
    $region33: #{tpu_custom_call.1} parent=1 // pred_fallthru
      _
    %117 = sfence
    %118 = vsyncpa [#allocation4], 1
    %119 = vsyncpa [#allocation7], 1
    %120 = vsyncpa [#allocation5], 1

</llo_original>
